<compile_context>
chip_gen: v7x
topology: tpu7x:2x2x1
jax: 0.10.0
libtpu: 0.0.40
codegen_flags: <defaults>
</compile_context>

<pallas_src>
import functools

import jax
import jax.numpy as jnp
from jax.experimental import pallas as pl
from jax.experimental.pallas import tpu as pltpu

IN_FEATURES = 10
HIDDEN_FEATURES = 24
OUT_FEATURES = 1
DEPTH = 2

# Max batch tile (lane dim). Big enough that per-grid-step overhead is <~10% of step
# time; small enough that double-buffered x/out tiles plus the in-kernel (24, tb) f32
# activations stay well inside even v5e's 16 MiB scoped-VMEM default.
DEFAULT_TB_MAX = 16384


def _round_up(n, m):
    return ((n + m - 1) // m) * m


def _cdiv(a, b):
    return -(-a // b)


def _choose_tiling(batch, tb_max):
    """Pad batch to a multiple of 128 (lane width), then split into near-equal
    128-aligned tiles: <128 columns of pad waste, and >=2 grid steps whenever the
    batch allows it so the "parallel" axis can use both v7x TensorCores."""
    padded128 = _round_up(batch, 128)
    num_tiles = _cdiv(padded128, tb_max)
    if num_tiles < 2 and padded128 >= 2 * 128:
        num_tiles = 2
    tb = _round_up(_cdiv(padded128, num_tiles), 128)
    num_tiles = _cdiv(padded128, tb)
    return tb, tb * num_tiles


def mlp_kernel(x_ref, w0_ref, b0_ref, wh_ref, bh_ref, wl_ref, bl_ref, o_ref):
    # x_ref: (IN_FEATURES, TB) -- batch on the lane axis (lane-dense).
    x = x_ref[...]

    # Folded (fc_first + fc0): h = W_eff0 @ x + b_eff0, then ReLU (f32 accumulation).
    h = jnp.dot(w0_ref[...], x, preferred_element_type=jnp.float32) + b0_ref[...]
    h = jnp.maximum(h, 0.0)

    # Remaining hidden layers (fc1 .. fc{depth-1}), statically unrolled.
    for k in range(DEPTH - 1):
        hk = h.astype(wh_ref.dtype)          # bf16 (or f32) MXU operand
        h = jnp.dot(wh_ref[k], hk, preferred_element_type=jnp.float32) + bh_ref[k]
        h = jnp.maximum(h, 0.0)

    # fc_last -> (OUT_FEATURES, TB): lane-dense output store.
    hl = h.astype(wl_ref.dtype)
    o_ref[...] = (jnp.dot(wl_ref[...], hl, preferred_element_type=jnp.float32)
                  + bl_ref[...]).astype(o_ref.dtype)


@functools.partial(jax.jit, static_argnames=("tb_max", "use_bf16"))
def mlp_forward(x, w_first, b_first, w_hid, b_hid, w_last, b_last,
                tb_max=DEFAULT_TB_MAX, use_bf16=True):
    batch = x.shape[0]
    tb, padded = _choose_tiling(batch, tb_max)
    grid = (padded // tb,)

    # Fold fc_first into hidden layer 0 (exact algebra, done in f32).
    w_eff0 = jnp.dot(w_hid[0], w_first)              # (H, IN)
    b_eff0 = jnp.dot(w_hid[0], b_first) + b_hid[0]   # (H, 1)
    w_rest = w_hid[1:]                               # (DEPTH-1, H, H)
    b_rest = b_hid[1:]                               # (DEPTH-1, H, 1)

    mm_dtype = jnp.bfloat16 if use_bf16 else jnp.float32
    w_eff0 = w_eff0.astype(mm_dtype)
    w_rest = w_rest.astype(mm_dtype)
    w_last_c = w_last.astype(mm_dtype)
    # Biases stay f32: bias add and ReLU are done in f32 inside the kernel.

    # Layout plumbing: batch onto the lane axis, pad to the tile grid.
    # (allow_input_fusion on operand 0 lets XLA fuse this into the pallas_call.)
    xT = jnp.transpose(x).astype(mm_dtype)           # (IN_FEATURES, batch)
    if padded != batch:
        xT = jnp.pad(xT, ((0, 0), (0, padded - batch)))

    const2 = lambda i: (0, 0)                        # weights/biases: VMEM-resident
    const3 = lambda i: (0, 0, 0)

    outT = pl.pallas_call(
        mlp_kernel,
        out_shape=jax.ShapeDtypeStruct((OUT_FEATURES, padded), jnp.float32),
        grid=grid,
        in_specs=[
            pl.BlockSpec((IN_FEATURES, tb), lambda i: (0, i)),                    # x tile
            pl.BlockSpec((HIDDEN_FEATURES, IN_FEATURES), const2),                 # W_eff0
            pl.BlockSpec((HIDDEN_FEATURES, 1), const2),                           # b_eff0
            pl.BlockSpec((DEPTH - 1, HIDDEN_FEATURES, HIDDEN_FEATURES), const3),  # W_hid[1:]
            pl.BlockSpec((DEPTH - 1, HIDDEN_FEATURES, 1), const3),                # b_hid[1:]
            pl.BlockSpec((OUT_FEATURES, HIDDEN_FEATURES), const2),                # W_last
            pl.BlockSpec((OUT_FEATURES, 1), const2),                              # b_last
        ],
        out_specs=pl.BlockSpec((OUT_FEATURES, tb), lambda i: (0, i)),
        compiler_params=pltpu.CompilerParams(
            dimension_semantics=("parallel",),   # batch tiles shard across TCs on v7x
            allow_input_fusion=[True, False, False, False, False, False, False],
            vmem_limit_bytes=32 * 1024 * 1024,
        ),
    )(xT, w_eff0, b_eff0, w_rest, b_rest, w_last_c, b_last)

    # Back to PyTorch layout (batch, out_features), dropping the padded tail.
    return jnp.transpose(outT[:, :batch])


def init_linear(key, fan_in, fan_out):
    """PyTorch-style nn.Linear init: U(-1/sqrt(fan_in), 1/sqrt(fan_in)).

    Weight in PyTorch layout (fan_out, fan_in); bias as a (fan_out, 1) column."""
    kw, kb = jax.random.split(key)
    bound = 1.0 / jnp.sqrt(jnp.float32(fan_in))
    w = jax.random.uniform(kw, (fan_out, fan_in), jnp.float32, -bound, bound)
    b = jax.random.uniform(kb, (fan_out, 1), jnp.float32, -bound, bound)
    return w, b


def reference_forward(x, w_first, b_first, w_hid, b_hid, w_last, b_last):
    h = x @ w_first.T + b_first[:, 0]
    for k in range(DEPTH):
        h = h @ w_hid[k].T + b_hid[k, :, 0]
        h = jnp.maximum(h, 0.0)
    return h @ w_last.T + b_last[:, 0]


if __name__ == "__main__":
    key = jax.random.PRNGKey(0)
    k_x, k_x2, k_first, k_h0, k_h1, k_last = jax.random.split(key, 6)

    w_first, b_first = init_linear(k_first, IN_FEATURES, HIDDEN_FEATURES)
    wh0, bh0 = init_linear(k_h0, HIDDEN_FEATURES, HIDDEN_FEATURES)
    wh1, bh1 = init_linear(k_h1, HIDDEN_FEATURES, HIDDEN_FEATURES)
    w_hid = jnp.stack([wh0, wh1], axis=0)          # (DEPTH, H, H)
    b_hid = jnp.stack([bh0, bh1], axis=0)          # (DEPTH, H, 1)
    w_last, b_last = init_linear(k_last, HIDDEN_FEATURES, OUT_FEATURES)

    # 1) Exact path (f32 matmuls) at the module's natural small shape.
    batch = 8
    x = jax.random.normal(k_x, (batch, IN_FEATURES), jnp.float32)
    out = jax.block_until_ready(
        mlp_forward(x, w_first, b_first, w_hid, b_hid, w_last, b_last, use_bf16=False))
    ref = reference_forward(x, w_first, b_first, w_hid, b_hid, w_last, b_last)
    assert out.shape == (batch, OUT_FEATURES)
    assert jnp.allclose(out, ref, atol=1e-5, rtol=1e-5)

    # 2) Default fast path (bf16 MXU operands, f32 accumulation) on a batch that is
    #    NOT a multiple of the lane width -> exercises padding + the 2-step parallel grid.
    batch2 = 200
    x2 = jax.random.normal(k_x2, (batch2, IN_FEATURES), jnp.float32)
    out2 = jax.block_until_ready(
        mlp_forward(x2, w_first, b_first, w_hid, b_hid, w_last, b_last))
    ref2 = reference_forward(x2, w_first, b_first, w_hid, b_hid, w_last, b_last)
    assert out2.shape == (batch2, OUT_FEATURES)
    assert jnp.allclose(out2, ref2, atol=5e-2, rtol=5e-2)   # bf16 operand tolerance

    # 3) Exact f32 path on the padded / multi-tile case for a tight check.
    out2_f32 = jax.block_until_ready(
        mlp_forward(x2, w_first, b_first, w_hid, b_hid, w_last, b_last, use_bf16=False))
    assert jnp.allclose(out2_f32, ref2, atol=1e-5, rtol=1e-5)

    print("KERNEL_OK")
</pallas_src>

<mosaic_0001>
module attributes {stable_mosaic.version = 11 : i64} {
  func.func @mlp_kernel(%arg0: i32, %arg1: memref<10x128xf32, #tpu.memory_space<vmem>>, %arg2: memref<24x10xf32, #tpu.memory_space<vmem>>, %arg3: memref<24x1xf32, #tpu.memory_space<vmem>>, %arg4: memref<1x24x24xf32, #tpu.memory_space<vmem>>, %arg5: memref<1x24x1xf32, #tpu.memory_space<vmem>>, %arg6: memref<1x24xf32, #tpu.memory_space<vmem>>, %arg7: memref<1x1xf32, #tpu.memory_space<vmem>>, %arg8: memref<1x128xf32, #tpu.memory_space<vmem>>) attributes {dimension_semantics = [#tpu.dimension_semantics<parallel>], iteration_bounds = array<i64: 1>, scalar_prefetch = 0 : i64, scratch_operands = 0 : i64, tpu.core_type = #tpu.core_type<tc>, window_params = [{transform_indices = @transform_0, window_bounds = array<i64: 10, 128>}, {pipeline_mode = #tpu.pipeline_mode<synchronous>, transform_indices = @transform_1, window_bounds = array<i64: 24, 10>}, {pipeline_mode = #tpu.pipeline_mode<synchronous>, transform_indices = @transform_2, window_bounds = array<i64: 24, 1>}, {pipeline_mode = #tpu.pipeline_mode<synchronous>, transform_indices = @transform_3, window_bounds = array<i64: 1, 24, 24>}, {pipeline_mode = #tpu.pipeline_mode<synchronous>, transform_indices = @transform_4, window_bounds = array<i64: 1, 24, 1>}, {pipeline_mode = #tpu.pipeline_mode<synchronous>, transform_indices = @transform_5, window_bounds = array<i64: 1, 24>}, {pipeline_mode = #tpu.pipeline_mode<synchronous>, transform_indices = @transform_6, window_bounds = array<i64: 1, 1>}, {transform_indices = @transform_7, window_bounds = array<i64: 1, 128>}]} {
    %c0 = arith.constant 0 : index
    %c0_0 = arith.constant 0 : index
    %0 = vector.load %arg1[%c0, %c0_0] : memref<10x128xf32, #tpu.memory_space<vmem>>, vector<10x128xf32>
    %c0_1 = arith.constant 0 : index
    %c0_2 = arith.constant 0 : index
    %1 = vector.load %arg2[%c0_1, %c0_2] : memref<24x10xf32, #tpu.memory_space<vmem>>, vector<24x10xf32>
    %cst = arith.constant dense<0.000000e+00> : vector<24x128xf32>
    %2 = tpu.matmul %1, %0, %cst {dimension_numbers = #tpu.dot_dimension_numbers<[1], [0], [0], [1], [0, 0, 1, 1], [], []>} : vector<24x10xf32>, vector<10x128xf32>, vector<24x128xf32> -> vector<24x128xf32>
    %c0_3 = arith.constant 0 : index
    %c0_4 = arith.constant 0 : index
    %3 = vector.load %arg3[%c0_3, %c0_4] : memref<24x1xf32, #tpu.memory_space<vmem>>, vector<24x1xf32>
    %4 = vector.broadcast %3 : vector<24x1xf32> to vector<24x128xf32>
    %5 = arith.addf %2, %4 : vector<24x128xf32>
    %cst_5 = arith.constant 0.000000e+00 : f32
    %6 = vector.broadcast %cst_5 : f32 to vector<24x128xf32>
    %7 = arith.maximumf %5, %6 : vector<24x128xf32>
    %c0_6 = arith.constant 0 : index
    %c0_7 = arith.constant 0 : index
    %c0_8 = arith.constant 0 : index
    %8 = vector.load %arg4[%c0_6, %c0_7, %c0_8] : memref<1x24x24xf32, #tpu.memory_space<vmem>>, vector<1x24x24xf32>
    %9 = vector.shape_cast %8 : vector<1x24x24xf32> to vector<24x24xf32>
    %cst_9 = arith.constant dense<0.000000e+00> : vector<24x128xf32>
    %10 = tpu.matmul %9, %7, %cst_9 {dimension_numbers = #tpu.dot_dimension_numbers<[1], [0], [0], [1], [0, 0, 1, 1], [], []>} : vector<24x24xf32>, vector<24x128xf32>, vector<24x128xf32> -> vector<24x128xf32>
    %c0_10 = arith.constant 0 : index
    %c0_11 = arith.constant 0 : index
    %c0_12 = arith.constant 0 : index
    %11 = vector.load %arg5[%c0_10, %c0_11, %c0_12] : memref<1x24x1xf32, #tpu.memory_space<vmem>>, vector<1x24x1xf32>
    %12 = vector.shape_cast %11 : vector<1x24x1xf32> to vector<24x1xf32>
    %13 = vector.broadcast %12 : vector<24x1xf32> to vector<24x128xf32>
    %14 = arith.addf %10, %13 : vector<24x128xf32>
    %cst_13 = arith.constant 0.000000e+00 : f32
    %15 = vector.broadcast %cst_13 : f32 to vector<24x128xf32>
    %16 = arith.maximumf %14, %15 : vector<24x128xf32>
    %c0_14 = arith.constant 0 : index
    %c0_15 = arith.constant 0 : index
    %17 = vector.load %arg6[%c0_14, %c0_15] : memref<1x24xf32, #tpu.memory_space<vmem>>, vector<1x24xf32>
    %cst_16 = arith.constant dense<0.000000e+00> : vector<1x128xf32>
    %18 = tpu.matmul %17, %16, %cst_16 {dimension_numbers = #tpu.dot_dimension_numbers<[1], [0], [0], [1], [0, 0, 1, 1], [], []>} : vector<1x24xf32>, vector<24x128xf32>, vector<1x128xf32> -> vector<1x128xf32>
    %c0_17 = arith.constant 0 : index
    %c0_18 = arith.constant 0 : index
    %19 = vector.load %arg7[%c0_17, %c0_18] : memref<1x1xf32, #tpu.memory_space<vmem>>, vector<1x1xf32>
    %20 = vector.broadcast %19 : vector<1x1xf32> to vector<1x128xf32>
    %21 = arith.addf %18, %20 : vector<1x128xf32>
    %c0_19 = arith.constant 0 : index
    %c0_20 = arith.constant 0 : index
    %22 = vector.load %arg8[%c0_19, %c0_20] : memref<1x128xf32, #tpu.memory_space<vmem>>, vector<1x128xf32>
    tpu.vector_store %arg8[%c0_19, %c0_20], %21 {strides = array<i32>} : memref<1x128xf32, #tpu.memory_space<vmem>>, vector<1x128xf32>,
    return
  }
  func.func @transform_0(%arg0: i32) -> (i32, i32) {
    %c0_i32 = arith.constant 0 : i32
    %c0_i32_0 = arith.constant 0 : i32
    return %c0_i32, %arg0 : i32, i32
  }
  func.func @transform_1(%arg0: i32) -> (i32, i32) {
    %c0_i32 = arith.constant 0 : i32
    %c0_i32_0 = arith.constant 0 : i32
    %c0_i32_1 = arith.constant 0 : i32
    return %c0_i32, %c0_i32_0 : i32, i32
  }
  func.func @transform_2(%arg0: i32) -> (i32, i32) {
    %c0_i32 = arith.constant 0 : i32
    %c0_i32_0 = arith.constant 0 : i32
    %c0_i32_1 = arith.constant 0 : i32
    return %c0_i32, %c0_i32_0 : i32, i32
  }
  func.func @transform_3(%arg0: i32) -> (i32, i32, i32) {
    %c0_i32 = arith.constant 0 : i32
    %c0_i32_0 = arith.constant 0 : i32
    %c0_i32_1 = arith.constant 0 : i32
    %c0_i32_2 = arith.constant 0 : i32
    return %c0_i32, %c0_i32_0, %c0_i32_1 : i32, i32, i32
  }
  func.func @transform_4(%arg0: i32) -> (i32, i32, i32) {
    %c0_i32 = arith.constant 0 : i32
    %c0_i32_0 = arith.constant 0 : i32
    %c0_i32_1 = arith.constant 0 : i32
    %c0_i32_2 = arith.constant 0 : i32
    return %c0_i32, %c0_i32_0, %c0_i32_1 : i32, i32, i32
  }
  func.func @transform_5(%arg0: i32) -> (i32, i32) {
    %c0_i32 = arith.constant 0 : i32
    %c0_i32_0 = arith.constant 0 : i32
    %c0_i32_1 = arith.constant 0 : i32
    return %c0_i32, %c0_i32_0 : i32, i32
  }
  func.func @transform_6(%arg0: i32) -> (i32, i32) {
    %c0_i32 = arith.constant 0 : i32
    %c0_i32_0 = arith.constant 0 : i32
    %c0_i32_1 = arith.constant 0 : i32
    return %c0_i32, %c0_i32_0 : i32, i32
  }
  func.func @transform_7(%arg0: i32) -> (i32, i32) {
    %c0_i32 = arith.constant 0 : i32
    %c0_i32_0 = arith.constant 0 : i32
    return %c0_i32, %arg0 : i32, i32
  }
}

</mosaic_0001>

<llo_original>
// kernel: mlp_forward.2
$region0: #{mlp_forward.2}
  #allocation0 [shape = 'u32[]', space=smem, size = 0x4, offset = 0x4, fixed_abs, tag = 'smem constant byte address 0x4 - core index']
  #allocation1 [shape = 'u32[144,128]{1,0:T(1,128)}', space=vmem, size = 0x12000, scoped, tag = 'internal scratch']
  #allocation2 [shape = 'u32[2048]{0}', space=vmem, size = 0x2000, scoped, tag = 'scoped memory for mlp_forward.2']
  #allocation3 [shape = 'u32[2048]{0}', space=vmem, size = 0x2000, scoped, tag = 'scoped memory for mlp_forward.2']
  #allocation4 [shape = 'u32[2048]{0}', space=vmem, size = 0x2000, scoped, tag = 'scoped memory for mlp_forward.2']
  #allocation5 [shape = 'u32[2048]{0}', space=vmem, size = 0x2000, scoped, tag = 'scoped memory for mlp_forward.2']
  #allocation6 [shape = 'u32[2048]{0}', space=vmem, size = 0x2000, scoped, tag = 'scoped memory for mlp_forward.2']
  #allocation7 [shape = 'f32[1,1]{1,0:T(1,128)S(1)}', space=vmem, size = 0x200, scoped, tag = 'scoped memory for mlp_forward.2']
  %s0 = inlined_call_operand.vmem [shape: f32[24,10], index: 0, kind: input, shape index: {}]
  %s1 = inlined_call_operand.vmem [shape: f32[24,1], index: 1, kind: input, shape index: {}]
  %s2 = inlined_call_operand.vmem [shape: f32[1,24,24], index: 2, kind: input, shape index: {}]
  %s3 = inlined_call_operand.vmem [shape: f32[1,24,1], index: 3, kind: input, shape index: {}]
  %s4 = inlined_call_operand.vmem [shape: f32[1,24], index: 4, kind: input, shape index: {}]
  %s5 = inlined_call_operand.<no memory space> [shape: f32[1,1], index: 5, kind: input, shape index: {}]
  %s6 = inlined_call_operand.vmem [shape: f32[10,8], index: 6, kind: input, shape index: {}]
  %s7 = inlined_call_operand.<no memory space> [shape: f32[], index: 7, kind: input, shape index: {}]
  %s8 = inlined_call_operand.vmem [shape: f32[1,128], index: 8, kind: output, shape index: {}]
  %s9 = sld [smem:[#allocation0]]
  $region38: #{mlp_forward.2} parent=0
    _
  %s11 = ssub.s32 1, %s9
  %s12 = scalar_select 0, %s11, %s9
  %v13 = vstv %s7
  %v14 = vstv %s5
  %15 = vst [vmem:[#allocation7] sm:$0x1] %v14
  $region1: #{mlp_forward.2} parent=0
    #allocation8 [shape = 'u8[8192]{0}', space=vmem, size = 0x2000, dematerialized = true, scoped, tag = 'FusionAdapter Buffer %fusion.5 = f32[10,128]{1,0:T(8,128)} fusion(%param_6.1, %param_7), kind=kLoop, calls=%fused_computation.6.clone, metadata={op_name="jit(mlp_forward)/jit(_pad)/pad" stack_frame_id=15}']
    // Predicated region
    $region2: #{mlp_forward.2} parent=1 // pred_check
      _
    $region3: #{mlp_forward.2} parent=1 // pred_check_branch
      %17 = sbr.rel (0) target = $region5
    $region4: #{mlp_forward.2} parent=1 // pred_region
      _
    $region5: #{mlp_forward.2} parent=1 // pred_fallthru
      _
    // Predicated region
    $region6: #{mlp_forward.2} parent=1 // pred_check
      _
    $region7: #{mlp_forward.2} parent=1 // pred_check_branch
      %19 = sbr.rel (0) target = $region9
    $region8: #{mlp_forward.2} parent=1 // pred_region
      _
    $region9: #{mlp_forward.2} parent=1 // pred_fallthru
      _
    // Predicated region
    $region10: #{mlp_forward.2} parent=1 // pred_check
      _
    $region11: #{mlp_forward.2} parent=1 // pred_check_branch
      %21 = sbr.rel (0) target = $region13
    $region12: #{mlp_forward.2} parent=1 // pred_region
      _
    $region13: #{mlp_forward.2} parent=1 // pred_fallthru
      _
    // Predicated region
    $region14: #{mlp_forward.2} parent=1 // pred_check
      _
    $region15: #{mlp_forward.2} parent=1 // pred_check_branch
      %23 = sbr.rel (0) target = $region17
    $region16: #{mlp_forward.2} parent=1 // pred_region
      _
    $region17: #{mlp_forward.2} parent=1 // pred_fallthru
      _
    // Predicated region
    $region18: #{mlp_forward.2} parent=1 // pred_check
      _
    $region19: #{mlp_forward.2} parent=1 // pred_check_branch
      %25 = sbr.rel (0) target = $region21
    $region20: #{mlp_forward.2} parent=1 // pred_region
      _
    $region21: #{mlp_forward.2} parent=1 // pred_fallthru
      _
    // Predicated region
    $region22: #{mlp_forward.2} parent=1 // pred_check
      _
    $region23: #{mlp_forward.2} parent=1 // pred_check_branch
      %27 = sbr.rel (0) target = $region25
    $region24: #{mlp_forward.2} parent=1 // pred_region
      _
    $region25: #{mlp_forward.2} parent=1 // pred_fallthru
      _
    // Predicated region
    $region26: #{mlp_forward.2} parent=1 // pred_check
      _
    $region27: #{mlp_forward.2} parent=1 // pred_check_branch
      %29 = sbr.rel (0) target = $region29
    $region28: #{mlp_forward.2} parent=1 // pred_region
      _
    $region29: #{mlp_forward.2} parent=1 // pred_fallthru
      _
    %v30 = vld [vmem:[%s6] sm:$0xff]
    %v31 = vlaneseq
    %v32 = vshrl.u32 %v31, 7
    %vm34 = vcmp.lt.s32.totalorder %v32, 10
    %v35 = vsel %vm34, %v30, %v13
    %v36 = vlaneseq
    %v37 = vand.u32 %v36, 127
    %vm39 = vcmp.lt.s32.totalorder %v37, 8
    %v40 = vsel %vm39, %v35, %v13
    %42 = vst [vmem:[#allocation8] sm:$0xff] %v40
    %s43 = scalar_lea.vmem %s6, 8
    %v44 = vld [vmem:[%s43] sm:$0xff]
    %v45 = vlaneseq
    %v46 = vshrl.u32 %v45, 7
    %v47 = vadd.s32 %v46, 8
    %vm48 = vcmp.lt.s32.totalorder %v47, 10
    %v49 = vsel %vm48, %v44, %v13
    %v50 = vlaneseq
    %v51 = vand.u32 %v50, 127
    %vm53 = vcmp.lt.s32.totalorder %v51, 8
    %v54 = vsel %vm53, %v49, %v13
    %s55 = scalar_lea.vmem [#allocation8], 8
    %57 = vst [vmem:[%s55] sm:$0xff] %v54
    %v58 = vld [vmem:[#allocation8] sm:$0xff]
    %v59 = vld [vmem:[#allocation8 + $0x8] sm:$0x3]
    %v60 = vld [vmem:[%s0] sm:$0xff]
    %v61 = vld [vmem:[%s0 + $0x8] sm:$0xff]
    %v62 = vld [vmem:[%s0 + $0x10] sm:$0xff]
    %v63 = vld [vmem:[%s1] sm:$0xff]
    %v64 = vld [vmem:[%s1 + $0x8] sm:$0xff]
    %v65 = vld [vmem:[%s1 + $0x10] sm:$0xff]
    %67 = vset.pattern.permute.xlu0 0
    %68 = vperm.xlu0 %67, %v63
    %v69 = vpop.permute.xlu0 %68
    %72 = vset.pattern.permute.xlu0 0
    %73 = vperm.xlu0 %72, %v64
    %v74 = vpop.permute.xlu0 %73
    %77 = vset.pattern.permute.xlu0 0
    %78 = vperm.xlu0 %77, %v65
    %v79 = vpop.permute.xlu0 %78
    %vm81 = vcmask 80896
    %v83 = vsel %vm81, %v60, 0
    %v86 = vsel %vm81, %v61, 0
    %v89 = vsel %vm81, %v62, 0
    %vm91 = vcmask 1041408
    %v93 = vsel %vm91, %v59, 0
    %95 = vmatprep.subr.mxu0 0.0
    %96 = vmatpush1.msra.mxu0 %v58
    %97 = vmatprep.subr.mxu0 0.0
    %98 = vmatpush1.msra.mxu0 %v93
    %99 = vmatprep.subr.mxu0 0.0
    %100 = vmatpush1.msra.mxu0 0.0
    %101 = vmatprep.subr.mxu0 0.0
    %102 = vmatpush1.msra.mxu0 0.0
    %103 = vmatprep.subr.mxu0 0.0
    %104 = vmatpush1.msra.mxu0 0.0
    %105 = vmatprep.subr.mxu0 0.0
    %106 = vmatpush1.msra.mxu0 0.0
    %107 = vmatprep.subr.mxu0 0.0
    %108 = vmatpush1.msra.mxu0 0.0
    %109 = vmatprep.subr.mxu0 0.0
    %110 = vmatpush1.msra.mxu0 0.0
    %111 = vmatprep.subr.mxu0 0.0
    %112 = vmatpush1.msra.mxu0 0.0
    %113 = vmatprep.subr.mxu0 0.0
    %114 = vmatpush1.msra.mxu0 0.0
    %115 = vmatprep.subr.mxu0 0.0
    %116 = vmatpush1.msra.mxu0 0.0
    %117 = vmatprep.subr.mxu0 0.0
    %118 = vmatpush1.msra.mxu0 0.0
    %119 = vmatprep.subr.mxu0 0.0
    %120 = vmatpush1.msra.mxu0 0.0
    %121 = vmatprep.subr.mxu0 0.0
    %122 = vmatpush1.msra.mxu0 0.0
    %123 = vmatprep.subr.mxu0 0.0
    %124 = vmatpush1.msra.mxu0 0.0
    %125 = vmatprep.subr.mxu0 0.0
    %126 = vmatpush1.msra.mxu0 0.0
    %127 = vmatprep.subr.mxu0 0.0
    %128 = vmatpush1.msra.mxu0 0.0
    %129 = vmatprep.subr.mxu0 0.0
    %130 = vmatpush1.msra.mxu0 0.0
    %131 = vmatprep.subr.mxu0 0.0
    %132 = vmatpush1.msra.mxu0 0.0
    %133 = vmatprep.subr.mxu0 0.0
    %134 = vmatpush1.msra.mxu0 0.0
    %135 = vmatprep.subr.mxu0 0.0
    %136 = vmatpush1.msra.mxu0 0.0
    %137 = vmatprep.subr.mxu0 0.0
    %138 = vmatpush1.msra.mxu0 0.0
    %139 = vmatprep.subr.mxu0 0.0
    %140 = vmatpush1.msra.mxu0 0.0
    %141 = vmatprep.subr.mxu0 0.0
    %142 = vmatpush1.msra.mxu0 0.0
    %143 = vmatprep.subr.mxu0 0.0
    %144 = vmatpush1.msra.mxu0 0.0
    %145 = vmatprep.subr.mxu0 0.0
    %146 = vmatpush1.msra.mxu0 0.0
    %147 = vmatprep.subr.mxu0 0.0
    %148 = vmatpush1.msra.mxu0 0.0
    %149 = vmatprep.subr.mxu0 0.0
    %150 = vmatpush1.msra.mxu0 0.0
    %151 = vmatprep.subr.mxu0 0.0
    %152 = vmatpush1.msra.mxu0 0.0
    %153 = vmatprep.subr.mxu0 0.0
    %154 = vmatpush1.msra.mxu0 0.0
    %155 = vmatprep.subr.mxu0 0.0
    %156 = vmatpush1.msra.mxu0 0.0
    %157 = vmatprep.subr.mxu0 0.0
    %158 = vmatpush1.msra.mxu0 0.0
    %159 = vmatprep.mubr.f32.mxu0 0.0
    %160 = vmatmul.mubr.f32.gmra.mrb[0].mxu0 %v83
    %v161 = vpop.f32.mrb[0].mxu0
    %v162 = vadd.f32 %v69, %v161
    %v163 = vpop.f32.mrb[0].mxu0
    %164 = vmatprep.mubr.f32.mxu0 0.0
    %165 = vmatmul.mubr.f32.gmra.mrb[0].mxu0 %v86
    %v166 = vpop.f32.mrb[0].mxu0
    %v167 = vadd.f32 %v74, %v166
    %v168 = vpop.f32.mrb[0].mxu0
    %169 = vmatprep.mubr.f32.mxu0 0.0
    %170 = vmatmul.mubr.f32.gmra.mrb[0].mxu0 %v89
    %v171 = vpop.f32.mrb[0].mxu0
    %v172 = vadd.f32 %v79, %v171
    %v173 = vpop.f32.mrb[0].mxu0
    %174 = vdwg.mxu0
    %v175 = vmax.f32 %v162, 0.0
    %v176 = vmax.f32 %v167, 0.0
    %v177 = vmax.f32 %v172, 0.0
    %v178 = vld [vmem:[%s2] sm:$0xff]
    %v179 = vld [vmem:[%s2 + $0x8] sm:$0xff]
    %v180 = vld [vmem:[%s2 + $0x10] sm:$0xff]
    %v181 = vld [vmem:[%s3] sm:$0xff]
    %v182 = vld [vmem:[%s3 + $0x8] sm:$0xff]
    %v183 = vld [vmem:[%s3 + $0x10] sm:$0xff]
    %185 = vset.pattern.permute.xlu0 0
    %186 = vperm.xlu0 %185, %v181
    %v187 = vpop.permute.xlu0 %186
    %190 = vset.pattern.permute.xlu0 0
    %191 = vperm.xlu0 %190, %v182
    %v192 = vpop.permute.xlu0 %191
    %195 = vset.pattern.permute.xlu0 0
    %196 = vperm.xlu0 %195, %v183
    %v197 = vpop.permute.xlu0 %196
    %vm199 = vcmask 195584
    %v201 = vsel %vm199, %v178, 0
    %v204 = vsel %vm199, %v179, 0
    %v207 = vsel %vm199, %v180, 0
    %209 = vmatprep.subr.mxu0 0.0
    %210 = vmatpush1.msra.mxu0 %v175
    %211 = vmatprep.subr.mxu0 0.0
    %212 = vmatpush1.msra.mxu0 %v176
    %213 = vmatprep.subr.mxu0 0.0
    %214 = vmatpush1.msra.mxu0 %v177
    %215 = vmatprep.subr.mxu0 0.0
    %216 = vmatpush1.msra.mxu0 0.0
    %217 = vmatprep.subr.mxu0 0.0
    %218 = vmatpush1.msra.mxu0 0.0
    %219 = vmatprep.subr.mxu0 0.0
    %220 = vmatpush1.msra.mxu0 0.0
    %221 = vmatprep.subr.mxu0 0.0
    %222 = vmatpush1.msra.mxu0 0.0
    %223 = vmatprep.subr.mxu0 0.0
    %224 = vmatpush1.msra.mxu0 0.0
    %225 = vmatprep.subr.mxu0 0.0
    %226 = vmatpush1.msra.mxu0 0.0
    %227 = vmatprep.subr.mxu0 0.0
    %228 = vmatpush1.msra.mxu0 0.0
    %229 = vmatprep.subr.mxu0 0.0
    %230 = vmatpush1.msra.mxu0 0.0
    %231 = vmatprep.subr.mxu0 0.0
    %232 = vmatpush1.msra.mxu0 0.0
    %233 = vmatprep.subr.mxu0 0.0
    %234 = vmatpush1.msra.mxu0 0.0
    %235 = vmatprep.subr.mxu0 0.0
    %236 = vmatpush1.msra.mxu0 0.0
    %237 = vmatprep.subr.mxu0 0.0
    %238 = vmatpush1.msra.mxu0 0.0
    %239 = vmatprep.subr.mxu0 0.0
    %240 = vmatpush1.msra.mxu0 0.0
    %241 = vmatprep.subr.mxu0 0.0
    %242 = vmatpush1.msra.mxu0 0.0
    %243 = vmatprep.subr.mxu0 0.0
    %244 = vmatpush1.msra.mxu0 0.0
    %245 = vmatprep.subr.mxu0 0.0
    %246 = vmatpush1.msra.mxu0 0.0
    %247 = vmatprep.subr.mxu0 0.0
    %248 = vmatpush1.msra.mxu0 0.0
    %249 = vmatprep.subr.mxu0 0.0
    %250 = vmatpush1.msra.mxu0 0.0
    %251 = vmatprep.subr.mxu0 0.0
    %252 = vmatpush1.msra.mxu0 0.0
    %253 = vmatprep.subr.mxu0 0.0
    %254 = vmatpush1.msra.mxu0 0.0
    %255 = vmatprep.subr.mxu0 0.0
    %256 = vmatpush1.msra.mxu0 0.0
    %257 = vmatprep.subr.mxu0 0.0
    %258 = vmatpush1.msra.mxu0 0.0
    %259 = vmatprep.subr.mxu0 0.0
    %260 = vmatpush1.msra.mxu0 0.0
    %261 = vmatprep.subr.mxu0 0.0
    %262 = vmatpush1.msra.mxu0 0.0
    %263 = vmatprep.subr.mxu0 0.0
    %264 = vmatpush1.msra.mxu0 0.0
    %265 = vmatprep.subr.mxu0 0.0
    %266 = vmatpush1.msra.mxu0 0.0
    %267 = vmatprep.subr.mxu0 0.0
    %268 = vmatpush1.msra.mxu0 0.0
    %269 = vmatprep.subr.mxu0 0.0
    %270 = vmatpush1.msra.mxu0 0.0
    %271 = vmatprep.subr.mxu0 0.0
    %272 = vmatpush1.msra.mxu0 0.0
    %273 = vmatprep.mubr.f32.mxu0 0.0
    %274 = vmatmul.mubr.f32.gmra.mrb[0].mxu0 %v201
    %v275 = vpop.f32.mrb[0].mxu0
    %v276 = vadd.f32 %v187, %v275
    %v277 = vpop.f32.mrb[0].mxu0
    %278 = vmatprep.mubr.f32.mxu0 0.0
    %279 = vmatmul.mubr.f32.gmra.mrb[0].mxu0 %v204
    %v280 = vpop.f32.mrb[0].mxu0
    %v281 = vadd.f32 %v192, %v280
    %v282 = vpop.f32.mrb[0].mxu0
    %283 = vmatprep.mubr.f32.mxu0 0.0
    %284 = vmatmul.mubr.f32.gmra.mrb[0].mxu0 %v207
    %v285 = vpop.f32.mrb[0].mxu0
    %v286 = vadd.f32 %v197, %v285
    %v287 = vpop.f32.mrb[0].mxu0
    %288 = vdwg.mxu0
    %v289 = vmax.f32 %v276, 0.0
    %v290 = vmax.f32 %v281, 0.0
    %v291 = vmax.f32 %v286, 0.0
    %v292 = vld [vmem:[%s4] sm:$0x1]
    %v293 = vld [vmem:[#allocation7] sm:$0x1]
    %295 = vset.pattern.permute.xlu0 0
    %296 = vperm.xlu0 %295, %v293
    %v297 = vpop.permute.xlu0 %296
    %v299 = vlaneseq
    %v300 = vshrl.u32 %v299, 7
    %v301 = vsub.s32 0, %v300
    %v302 = vrot.slane %v297, %v301
    %v304 = vsel %vm199, %v292, 0
    %306 = vmatprep.subr.mxu0 0.0
    %307 = vmatpush1.msra.mxu0 %v289
    %308 = vmatprep.subr.mxu0 0.0
    %309 = vmatpush1.msra.mxu0 %v290
    %310 = vmatprep.subr.mxu0 0.0
    %311 = vmatpush1.msra.mxu0 %v291
    %312 = vmatprep.subr.mxu0 0.0
    %313 = vmatpush1.msra.mxu0 0.0
    %314 = vmatprep.subr.mxu0 0.0
    %315 = vmatpush1.msra.mxu0 0.0
    %316 = vmatprep.subr.mxu0 0.0
    %317 = vmatpush1.msra.mxu0 0.0
    %318 = vmatprep.subr.mxu0 0.0
    %319 = vmatpush1.msra.mxu0 0.0
    %320 = vmatprep.subr.mxu0 0.0
    %321 = vmatpush1.msra.mxu0 0.0
    %322 = vmatprep.subr.mxu0 0.0
    %323 = vmatpush1.msra.mxu0 0.0
    %324 = vmatprep.subr.mxu0 0.0
    %325 = vmatpush1.msra.mxu0 0.0
    %326 = vmatprep.subr.mxu0 0.0
    %327 = vmatpush1.msra.mxu0 0.0
    %328 = vmatprep.subr.mxu0 0.0
    %329 = vmatpush1.msra.mxu0 0.0
    %330 = vmatprep.subr.mxu0 0.0
    %331 = vmatpush1.msra.mxu0 0.0
    %332 = vmatprep.subr.mxu0 0.0
    %333 = vmatpush1.msra.mxu0 0.0
    %334 = vmatprep.subr.mxu0 0.0
    %335 = vmatpush1.msra.mxu0 0.0
    %336 = vmatprep.subr.mxu0 0.0
    %337 = vmatpush1.msra.mxu0 0.0
    %338 = vmatprep.subr.mxu0 0.0
    %339 = vmatpush1.msra.mxu0 0.0
    %340 = vmatprep.subr.mxu0 0.0
    %341 = vmatpush1.msra.mxu0 0.0
    %342 = vmatprep.subr.mxu0 0.0
    %343 = vmatpush1.msra.mxu0 0.0
    %344 = vmatprep.subr.mxu0 0.0
    %345 = vmatpush1.msra.mxu0 0.0
    %346 = vmatprep.subr.mxu0 0.0
    %347 = vmatpush1.msra.mxu0 0.0
    %348 = vmatprep.subr.mxu0 0.0
    %349 = vmatpush1.msra.mxu0 0.0
    %350 = vmatprep.subr.mxu0 0.0
    %351 = vmatpush1.msra.mxu0 0.0
    %352 = vmatprep.subr.mxu0 0.0
    %353 = vmatpush1.msra.mxu0 0.0
    %354 = vmatprep.subr.mxu0 0.0
    %355 = vmatpush1.msra.mxu0 0.0
    %356 = vmatprep.subr.mxu0 0.0
    %357 = vmatpush1.msra.mxu0 0.0
    %358 = vmatprep.subr.mxu0 0.0
    %359 = vmatpush1.msra.mxu0 0.0
    %360 = vmatprep.subr.mxu0 0.0
    %361 = vmatpush1.msra.mxu0 0.0
    %362 = vmatprep.subr.mxu0 0.0
    %363 = vmatpush1.msra.mxu0 0.0
    %364 = vmatprep.subr.mxu0 0.0
    %365 = vmatpush1.msra.mxu0 0.0
    %366 = vmatprep.subr.mxu0 0.0
    %367 = vmatpush1.msra.mxu0 0.0
    %368 = vmatprep.subr.mxu0 0.0
    %369 = vmatpush1.msra.mxu0 0.0
    %370 = vmatprep.mubr.f32.mxu0 0.0
    %371 = vmatmul.mubr.f32.gmra.mrb[0].mxu0 %v304
    %v372 = vpop.f32.mrb[0].mxu0
    %v373 = vadd.f32 %v302, %v372
    %v374 = vpop.f32.mrb[0].mxu0
    %375 = vdwg.mxu0
    %376 = vst [vmem:[%s8] sm:$0x1] %v373
    // Predicated region
    $region30: #{mlp_forward.2} parent=1 // pred_check
      _
    $region31: #{mlp_forward.2} parent=1 // pred_check_branch
      %378 = sbr.rel (0) target = $region33
    $region32: #{mlp_forward.2} parent=1 // pred_region
      _
    $region33: #{mlp_forward.2} parent=1 // pred_fallthru
      _
    // Predicated region
    $region34: #{mlp_forward.2} parent=1 // pred_check
      _
    $region35: #{mlp_forward.2} parent=1 // pred_check_branch
      %380 = sbr.rel (0) target = $region37
    $region36: #{mlp_forward.2} parent=1 // pred_region
      _
    $region37: #{mlp_forward.2} parent=1 // pred_fallthru
      _

</llo_original>
